<compile_context>
chip_gen: v7x
topology: tpu7x:2x2x1
jax: 0.10.0
libtpu: 0.0.40
codegen_flags: <defaults>
</compile_context>

<pallas_src>
import jax
import jax.numpy as jnp
from jax.experimental import pallas as pl
from jax.experimental.pallas import tpu as pltpu


def _round_up(n: int, m: int) -> int:
    return ((n + m - 1) // m) * m


def _cdiv(n: int, m: int) -> int:
    return (n + m - 1) // m


def linear_fold_kernel(x_ref, w_ref, b_ref, o_ref):
    # x_ref: (TBf, L) VMEM tile of folded x     (L = F*Dp, 128 when D<=128)
    # w_ref: (L, F)   VMEM, grid-invariant block-folded weight
    # b_ref: (1, 1)   SMEM scalar bias
    # o_ref: (TBf, F) VMEM output tile (batch-major: row r, col j -> batch F*r+j)
    acc = jnp.dot(x_ref[...], w_ref[...], preferred_element_type=jnp.float32)
    o_ref[...] = acc + b_ref[0, 0]


def linear_regression_forward(x, w, b, *,
                              target_tile_bytes=4 * 1024 * 1024,
                              min_pallas_bytes=4 * 1024 * 1024,
                              force_pallas=False):
    """x: (B, D) f32, w: (1, D) f32 (PyTorch (out,in) layout), b: (1,) f32 -> (B, 1)."""
    x = jnp.asarray(x, jnp.float32)
    B, D = x.shape
    w_row = jnp.asarray(w, jnp.float32).reshape(1, D)
    b_s = jnp.asarray(b, jnp.float32).reshape(1, 1)

    # Bytes-based gate: below a few MiB of x the kernel is pure fixed cost;
    # plain XLA matches or beats it.
    if (not force_pallas) and (B * D * 4 < min_pallas_bytes):
        return x @ w_row.T + b_s

    # ---- fold the feature dim onto the 128-lane axis --------------------
    if D <= 128:
        Dp = 1
        while Dp < D:          # smallest power of two >= D (divides 128)
            Dp *= 2
        F = 128 // Dp          # rows of x packed per folded row
    else:
        Dp = _round_up(D, 128)
        F = 1
    L = F * Dp                 # folded lane width (128 when D <= 128)

    if Dp != D:                # zero-pad features (zero weight -> no effect)
        x = jnp.pad(x, ((0, 0), (0, Dp - D)))
        w_row = jnp.pad(w_row, ((0, 0), (0, Dp - D)))

    # ---- tile selection on the folded-row axis ---------------------------
    B_fold = _cdiv(B, F)
    rows_per_tile = max(8, target_tile_bytes // (L * 4))    # ~4 MiB / grid step
    num_tiles = max(2, _cdiv(B_fold, rows_per_tile))        # >= 2 steps for v7x megacore
    TBf = _round_up(_cdiv(B_fold, num_tiles), 8)            # sublane multiple
    num_tiles = _cdiv(B_fold, TBf)
    B_fold_pad = num_tiles * TBf
    B_pad = B_fold_pad * F

    if B_pad != B:
        x = jnp.pad(x, ((0, B_pad - B), (0, 0)))
    x_fold = x.reshape(B_fold_pad, L)                        # free, row-major

    # Block-folded weight: w_fold[Dp*j + d, j] = w[d]  (zeros elsewhere).
    w_fold = jnp.kron(jnp.eye(F, dtype=jnp.float32), w_row.reshape(Dp, 1))  # (L, F)

    out_fold = pl.pallas_call(
        linear_fold_kernel,
        out_shape=jax.ShapeDtypeStruct((B_fold_pad, F), jnp.float32),
        grid=(num_tiles,),
        in_specs=[
            pl.BlockSpec((TBf, L), lambda i: (i, 0)),               # folded x tile (pipelined)
            pl.BlockSpec((L, F), lambda i: (0, 0)),                 # weight block, grid-invariant
            pl.BlockSpec(memory_space=pltpu.MemorySpace.SMEM),      # scalar bias
        ],
        out_specs=pl.BlockSpec((TBf, F), lambda i: (i, 0)),         # batch-major output tile
        compiler_params=pltpu.CompilerParams(
            dimension_semantics=("parallel",),
            vmem_limit_bytes=32 * 1024 * 1024,
        ),
    )(x_fold, w_fold, b_s)

    # (B_fold_pad, F) row-major == batch order; free reshape, slice off padding.
    return out_fold.reshape(B_pad, 1)[:B]


if __name__ == "__main__":
    key = jax.random.PRNGKey(0)
    batch, in_dim = 1024, 16   # X_train.shape[1] -> in_dim

    kx, kw, kb = jax.random.split(key, 3)
    x = jax.random.normal(kx, (batch, in_dim), dtype=jnp.float32)

    # Deterministic init mirroring nn.Linear default: U(-1/sqrt(D), 1/sqrt(D))
    bound = 1.0 / (in_dim ** 0.5)
    w = jax.random.uniform(kw, (1, in_dim), minval=-bound, maxval=bound,
                           dtype=jnp.float32)          # PyTorch layout (out, in)
    b = jax.random.uniform(kb, (1,), minval=-bound, maxval=bound,
                           dtype=jnp.float32)

    # Pallas kernel path (forced at demo size; 2 grid steps of folded tiles).
    y = linear_regression_forward(x, w, b, force_pallas=True)
    jax.block_until_ready(y)
    y_ref = x @ w.T + b
    assert y.shape == (batch, 1)
    assert jnp.allclose(y, y_ref, atol=1e-5, rtol=1e-5)

    # Ragged batch (not a multiple of the fold factor) through the kernel.
    x_rag = x[:1000]
    y_rag = linear_regression_forward(x_rag, w, b, force_pallas=True)
    jax.block_until_ready(y_rag)
    assert y_rag.shape == (1000, 1)
    assert jnp.allclose(y_rag, x_rag @ w.T + b, atol=1e-5, rtol=1e-5)

    # Tiny-batch path (below the bytes gate -> plain XLA, no kernel launch).
    x_small = x[:8]
    y_small = linear_regression_forward(x_small, w, b)
    assert jnp.allclose(y_small, x_small @ w.T + b, atol=1e-5, rtol=1e-5)

    print("KERNEL_OK")
</pallas_src>

<mosaic_0001>
module attributes {stable_mosaic.version = 11 : i64} {
  func.func @linear_fold_kernel(%arg0: i32, %arg1: memref<64x128xf32, #tpu.memory_space<vmem>>, %arg2: memref<128x8xf32, #tpu.memory_space<vmem>>, %arg3: memref<1x1xf32, #tpu.memory_space<smem>>, %arg4: memref<64x8xf32, #tpu.memory_space<vmem>>) attributes {dimension_semantics = [#tpu.dimension_semantics<parallel>], iteration_bounds = array<i64: 2>, scalar_prefetch = 0 : i64, scratch_operands = 0 : i64, tpu.core_type = #tpu.core_type<tc>, window_params = [{transform_indices = @transform_0, window_bounds = array<i64: 64, 128>}, {pipeline_mode = #tpu.pipeline_mode<synchronous>, transform_indices = @transform_1, window_bounds = array<i64: 128, 8>}, {transform_indices = @transform_2, window_bounds = array<i64: 1, 1>}, {transform_indices = @transform_3, window_bounds = array<i64: 64, 8>}]} {
    %c0 = arith.constant 0 : index
    %c0_0 = arith.constant 0 : index
    %0 = vector.load %arg1[%c0, %c0_0] : memref<64x128xf32, #tpu.memory_space<vmem>>, vector<64x128xf32>
    %c0_1 = arith.constant 0 : index
    %c0_2 = arith.constant 0 : index
    %1 = vector.load %arg2[%c0_1, %c0_2] : memref<128x8xf32, #tpu.memory_space<vmem>>, vector<128x8xf32>
    %cst = arith.constant dense<0.000000e+00> : vector<64x8xf32>
    %2 = tpu.matmul %0, %1, %cst {dimension_numbers = #tpu.dot_dimension_numbers<[1], [0], [0], [1], [0, 0, 1, 1], [], []>} : vector<64x128xf32>, vector<128x8xf32>, vector<64x8xf32> -> vector<64x8xf32>
    %c0_3 = arith.constant 0 : index
    %c0_4 = arith.constant 0 : index
    %3 = memref.load %arg3[%c0_3, %c0_4] : memref<1x1xf32, #tpu.memory_space<smem>>
    %4 = vector.broadcast %3 : f32 to vector<64x8xf32>
    %5 = arith.addf %2, %4 : vector<64x8xf32>
    %c0_5 = arith.constant 0 : index
    %c0_6 = arith.constant 0 : index
    %6 = vector.load %arg4[%c0_5, %c0_6] : memref<64x8xf32, #tpu.memory_space<vmem>>, vector<64x8xf32>
    tpu.vector_store %arg4[%c0_5, %c0_6], %5 {strides = array<i32>} : memref<64x8xf32, #tpu.memory_space<vmem>>, vector<64x8xf32>,
    return
  }
  func.func @transform_0(%arg0: i32) -> (i32, i32) {
    %c0_i32 = arith.constant 0 : i32
    %c0_i32_0 = arith.constant 0 : i32
    return %arg0, %c0_i32 : i32, i32
  }
  func.func @transform_1(%arg0: i32) -> (i32, i32) {
    %c0_i32 = arith.constant 0 : i32
    %c0_i32_0 = arith.constant 0 : i32
    %c0_i32_1 = arith.constant 0 : i32
    return %c0_i32, %c0_i32_0 : i32, i32
  }
  func.func @transform_2(%arg0: i32) -> (i32, i32) {
    %c0_i32 = arith.constant 0 : i32
    %c0_i32_0 = arith.constant 0 : i32
    %c0_i32_1 = arith.constant 0 : i32
    return %c0_i32, %c0_i32_0 : i32, i32
  }
  func.func @transform_3(%arg0: i32) -> (i32, i32) {
    %c0_i32 = arith.constant 0 : i32
    %c0_i32_0 = arith.constant 0 : i32
    return %arg0, %c0_i32 : i32, i32
  }
}

</mosaic_0001>

<llo_original>
// kernel: tpu_custom_call.1
$region0: #{tpu_custom_call.1}
  #allocation0 [shape = 'u32[]', space=smem, size = 0x4, offset = 0x4, fixed_abs, tag = 'smem constant byte address 0x4 - core index']
  #allocation1 [shape = 'u32[144,128]{1,0:T(1,128)}', space=vmem, size = 0x12000, scoped, tag = 'internal scratch']
  #allocation2 [shape = 'f32[1,1]{1,0:T(1,128)S(6)}', space=smem, size = 0x200, scoped, tag = 'scoped memory for tpu_custom_call.1']
  %s0 = inlined_call_operand.vmem [shape: f32[128,128], index: 0, kind: input, shape index: {}]
  %s1 = inlined_call_operand.vmem [shape: f32[128,8], index: 1, kind: input, shape index: {}]
  %s2 = inlined_call_operand.<no memory space> [shape: f32[1,1], index: 2, kind: input, shape index: {}]
  %s3 = inlined_call_operand.vmem [shape: f32[128,8], index: 3, kind: output, shape index: {}]
  %s4 = sld [smem:[#allocation0]]
  $region45: #{tpu_custom_call.1} parent=0
    _
  %s6 = ssub.s32 1, %s4
  %s7 = scalar_select 0, %s6, %s4
  %8 = sst [smem:[#allocation2]] %s2
  loop: start=0, step=1, limit=4
  $region2: #{tpu_custom_call.1} parent=0 // loop_pre_header
    _
  $region3: #{tpu_custom_call.1} parent=0 // loop_header
    %s10 = sphi 0, %s14
    %p11 = scmp.ge.s32.totalorder %s10, 4
    %s20 = sphi 0, %s22
    %s23 = sphi 0, %s20
    %s24 = sphi 0, %s23
    %s40 = sphi 0, %s24
    %s44 = sphi 0, %s44
    %s46 = sphi 0, %s44
    %s47 = sphi 0, %s46
    %s61 = sphi 0, %s47
    %s65 = sphi 0, %s65
    %s67 = sphi 0, %s65
    %s68 = sphi 0, %s67
    %s82 = sphi 0, %s68
    %s88 = sphi 0, %s90
    %s91 = sphi 0, %s88
    %s92 = sphi 0, %s91
    %s108 = sphi 0, %s92
  $region4: #{tpu_custom_call.1} parent=0 // loop_header_branch
    %13 = sbr.rel (%p11) target = $region8
  $region5: #{tpu_custom_call.1} parent=0 // loop_body
    %s15 = ssub.s32 %s10, 1
    %s16 = ssub.s32 %s10, 2
    %s17 = sadd.s32 %s10, 1
    %s18 = ssub.s32 %s10, %s17
    %p19 = scmp.eq.s32.totalorder %s18, 0
    %s21 = sadd.s32 %s20, 1
    %s22 = scalar_select %p19, %s20, %s21
    %p25 = pneg %p19
    %p26 = scmp.eq.s32.totalorder %s10, 1
    %p27 = por %p25, %p26
    %p28 = scmp.ne.s32.totalorder %s20, %s23
    %p29 = scmp.eq.s32.totalorder %s10, 0
    %p30 = por %p28, %p29
    %p31 = scmp.ne.s32.totalorder %s20, %s23
    %p32 = scmp.eq.s32.totalorder %s15, 1
    %p33 = por %p31, %p32
    %p34 = scmp.ne.s32.totalorder %s23, %s24
    %p35 = scmp.eq.s32.totalorder %s15, 0
    %p36 = por %p34, %p35
    %p37 = scmp.ne.s32.totalorder %s23, %s24
    %p38 = scmp.eq.s32.totalorder %s16, 1
    %p39 = por %p37, %p38
    %p41 = scmp.ne.s32.totalorder %s24, %s40
    %p42 = scmp.eq.s32.totalorder %s16, 0
    %p43 = por %p41, %p42
    %s45 = sadd.s32 %s44, 1
    %p48 = scmp.eq.s32.totalorder %s10, 1
    %p49 = scmp.ne.s32.totalorder %s44, %s46
    %p50 = scmp.eq.s32.totalorder %s10, 0
    %p51 = por %p49, %p50
    %p52 = scmp.ne.s32.totalorder %s44, %s46
    %p53 = scmp.eq.s32.totalorder %s15, 1
    %p54 = por %p52, %p53
    %p55 = scmp.ne.s32.totalorder %s46, %s47
    %p56 = scmp.eq.s32.totalorder %s15, 0
    %p57 = por %p55, %p56
    %p58 = scmp.ne.s32.totalorder %s46, %s47
    %p59 = scmp.eq.s32.totalorder %s16, 1
    %p60 = por %p58, %p59
    %p62 = scmp.ne.s32.totalorder %s47, %s61
    %p63 = scmp.eq.s32.totalorder %s16, 0
    %p64 = por %p62, %p63
    %s66 = sadd.s32 %s65, 1
    %p69 = scmp.eq.s32.totalorder %s10, 1
    %p70 = scmp.ne.s32.totalorder %s65, %s67
    %p71 = scmp.eq.s32.totalorder %s10, 0
    %p72 = por %p70, %p71
    %p73 = scmp.ne.s32.totalorder %s65, %s67
    %p74 = scmp.eq.s32.totalorder %s15, 1
    %p75 = por %p73, %p74
    %p76 = scmp.ne.s32.totalorder %s67, %s68
    %p77 = scmp.eq.s32.totalorder %s15, 0
    %p78 = por %p76, %p77
    %p79 = scmp.ne.s32.totalorder %s67, %s68
    %p80 = scmp.eq.s32.totalorder %s16, 1
    %p81 = por %p79, %p80
    %p83 = scmp.ne.s32.totalorder %s68, %s82
    %p84 = scmp.eq.s32.totalorder %s16, 0
    %p85 = por %p83, %p84
    %s86 = ssub.s32 %s10, %s17
    %p87 = scmp.eq.s32.totalorder %s86, 0
    %s89 = sadd.s32 %s88, 1
    %s90 = scalar_select %p87, %s88, %s89
    %p93 = pneg %p87
    %p94 = scmp.eq.s32.totalorder %s10, 1
    %p95 = por %p93, %p94
    %p96 = scmp.ne.s32.totalorder %s88, %s91
    %p97 = scmp.eq.s32.totalorder %s10, 0
    %p98 = por %p96, %p97
    %p99 = scmp.ne.s32.totalorder %s88, %s91
    %p100 = scmp.eq.s32.totalorder %s15, 1
    %p101 = por %p99, %p100
    %p102 = scmp.ne.s32.totalorder %s91, %s92
    %p103 = scmp.eq.s32.totalorder %s15, 0
    %p104 = por %p102, %p103
    %p105 = scmp.ne.s32.totalorder %s91, %s92
    %p106 = scmp.eq.s32.totalorder %s16, 1
    %p107 = por %p105, %p106
    %p109 = scmp.ne.s32.totalorder %s92, %s108
    %p110 = scmp.eq.s32.totalorder %s16, 0
    %p111 = por %p109, %p110
    %p112 = scmp.le.s32.totalorder 1, %s10
    %p113 = scmp.lt.s32.totalorder %s10, 3
    %p114 = pnand %p112, %p113
    %p115 = pneg %p114
    // Predicated region
    $region9: #{tpu_custom_call.1} parent=5 // pred_check
      _
    $region10: #{tpu_custom_call.1} parent=5 // pred_check_branch
      %117 = sbr.rel (%p114) target = $region12
    $region11: #{tpu_custom_call.1} parent=5 // pred_region
      %s118 = ssub.s32 %s10, 1
      // Predicated region
      $region13: #{tpu_custom_call.1} parent=11 // pred_check
        %p119 = pneg %p57
      $region14: #{tpu_custom_call.1} parent=11 // pred_check_branch
        %121 = sbr.rel (%p119) target = $region16
      $region15: #{tpu_custom_call.1} parent=11 // pred_region
        _
      $region16: #{tpu_custom_call.1} parent=11 // pred_fallthru
        _
      // Predicated region
      $region17: #{tpu_custom_call.1} parent=11 // pred_check
        %p122 = pneg %p78
      $region18: #{tpu_custom_call.1} parent=11 // pred_check_branch
        %124 = sbr.rel (%p122) target = $region20
      $region19: #{tpu_custom_call.1} parent=11 // pred_region
        _
      $region20: #{tpu_custom_call.1} parent=11 // pred_fallthru
        _
    $region12: #{tpu_custom_call.1} parent=5 // pred_fallthru
      _
    %p125 = scmp.lt.s32.totalorder %s10, 2
    // Predicated region
    $region21: #{tpu_custom_call.1} parent=5 // pred_check
      %p126 = pneg %p125
    $region22: #{tpu_custom_call.1} parent=5 // pred_check_branch
      %128 = sbr.rel (%p126) target = $region24
    $region23: #{tpu_custom_call.1} parent=5 // pred_region
      // Predicated region
      $region25: #{tpu_custom_call.1} parent=23 // pred_check
        %p129 = pneg %p30
      $region26: #{tpu_custom_call.1} parent=23 // pred_check_branch
        %131 = sbr.rel (%p129) target = $region28
      $region27: #{tpu_custom_call.1} parent=23 // pred_region
        %s132 = smul.u32 8, %s10
        %p133 = scmp.lt.s32.totalorder %s132, 15
        %s134 = scalar_select %p133, %s132, 15
        %s135 = smul.addr %s134, 8
        %s136 = scalar_lea.vmem %s0, %s135
        %s137 = smul.u32 8, %s10
      $region28: #{tpu_custom_call.1} parent=23 // pred_fallthru
        _
    $region24: #{tpu_custom_call.1} parent=5 // pred_fallthru
      _
    %p138 = scmp.le.s32.totalorder 1, %s10
    %p139 = scmp.lt.s32.totalorder %s10, 3
    %p140 = pnand %p138, %p139
    %p141 = pneg %p140
    // Predicated region
    $region29: #{tpu_custom_call.1} parent=5 // pred_check
      _
    $region30: #{tpu_custom_call.1} parent=5 // pred_check_branch
      %143 = sbr.rel (%p140) target = $region32
    $region31: #{tpu_custom_call.1} parent=5 // pred_region
      %s144 = ssub.s32 %s10, 1
      %s145 = smul.u32 8, %s15
      %p146 = scmp.lt.s32.totalorder %s145, 15
      %s147 = scalar_select %p146, %s145, 15
      %s148 = smul.addr %s147, 8
      %s149 = scalar_lea.vmem %s0, %s148
      %p150 = pneg %p36
      %p151 = pneg %p33
      %p152 = pneg %p57
      %p153 = pneg %p54
      %p154 = pneg %p78
      %p155 = pneg %p75
      %p156 = pneg %p104
      %p157 = pneg %p101
      %s158 = smul.u32 8, %s15
      %p159 = scmp.lt.s32.totalorder %s158, 15
      %s160 = scalar_select %p159, %s158, 15
      %s161 = smul.addr %s160, 8
      %s162 = scalar_lea.vmem %s3, %s161
      %s163 = smul.u32 8, %s15
      %p164 = scmp.lt.s32.totalorder %s163, 15
      %s165 = scalar_select %p164, %s163, 15
      %s166 = smul.addr %s165, 8
      %s167 = scalar_lea.vmem %s0, %s166
      %s168 = smul.u32 8, %s15
      %s169 = smul.u32 8, %s15
      %p170 = scmp.lt.s32.totalorder %s169, 15
      %s171 = scalar_select %p170, %s169, 15
      %s172 = smul.addr %s171, 8
      %s173 = scalar_lea.vmem %s3, %s172
      %s174 = smul.u32 8, %s15
      %v175 = vld [vmem:[%s167] sm:$0xff]
      %v176 = vld [vmem:[%s167 + $0x8] sm:$0xff]
      %v177 = vld [vmem:[%s167 + $0x10] sm:$0xff]
      %v178 = vld [vmem:[%s167 + $0x18] sm:$0xff]
      %v179 = vld [vmem:[%s167 + $0x20] sm:$0xff]
      %v180 = vld [vmem:[%s167 + $0x28] sm:$0xff]
      %v181 = vld [vmem:[%s167 + $0x30] sm:$0xff]
      %v182 = vld [vmem:[%s167 + $0x38] sm:$0xff]
      %v183 = vld [vmem:[%s1] sm:$0xff]
      %v184 = vld [vmem:[%s1 + $0x8] sm:$0xff]
      %v185 = vld [vmem:[%s1 + $0x10] sm:$0xff]
      %v186 = vld [vmem:[%s1 + $0x18] sm:$0xff]
      %v187 = vld [vmem:[%s1 + $0x20] sm:$0xff]
      %v188 = vld [vmem:[%s1 + $0x28] sm:$0xff]
      %v189 = vld [vmem:[%s1 + $0x30] sm:$0xff]
      %v190 = vld [vmem:[%s1 + $0x38] sm:$0xff]
      %v191 = vld [vmem:[%s1 + $0x40] sm:$0xff]
      %v192 = vld [vmem:[%s1 + $0x48] sm:$0xff]
      %v193 = vld [vmem:[%s1 + $0x50] sm:$0xff]
      %v194 = vld [vmem:[%s1 + $0x58] sm:$0xff]
      %v195 = vld [vmem:[%s1 + $0x60] sm:$0xff]
      %v196 = vld [vmem:[%s1 + $0x68] sm:$0xff]
      %v197 = vld [vmem:[%s1 + $0x70] sm:$0xff]
      %v198 = vld [vmem:[%s1 + $0x78] sm:$0xff]
      %s199 = sld [smem:[#allocation2]]
      %v200 = vstv %s199
      %201 = vmatprep.subr.mxu0 0.0
      %202 = vmatpush1.msra.mxu0 %v183
      %203 = vmatprep.subr.mxu0 0.0
      %204 = vmatpush1.msra.mxu0 %v184
      %205 = vmatprep.subr.mxu0 0.0
      %206 = vmatpush1.msra.mxu0 %v185
      %207 = vmatprep.subr.mxu0 0.0
      %208 = vmatpush1.msra.mxu0 %v186
      %209 = vmatprep.subr.mxu0 0.0
      %210 = vmatpush1.msra.mxu0 %v187
      %211 = vmatprep.subr.mxu0 0.0
      %212 = vmatpush1.msra.mxu0 %v188
      %213 = vmatprep.subr.mxu0 0.0
      %214 = vmatpush1.msra.mxu0 %v189
      %215 = vmatprep.subr.mxu0 0.0
      %216 = vmatpush1.msra.mxu0 %v190
      %217 = vmatprep.subr.mxu0 0.0
      %218 = vmatpush1.msra.mxu0 %v191
      %219 = vmatprep.subr.mxu0 0.0
      %220 = vmatpush1.msra.mxu0 %v192
      %221 = vmatprep.subr.mxu0 0.0
      %222 = vmatpush1.msra.mxu0 %v193
      %223 = vmatprep.subr.mxu0 0.0
      %224 = vmatpush1.msra.mxu0 %v194
      %225 = vmatprep.subr.mxu0 0.0
      %226 = vmatpush1.msra.mxu0 %v195
      %227 = vmatprep.subr.mxu0 0.0
      %228 = vmatpush1.msra.mxu0 %v196
      %229 = vmatprep.subr.mxu0 0.0
      %230 = vmatpush1.msra.mxu0 %v197
      %231 = vmatprep.subr.mxu0 0.0
      %232 = vmatpush1.msra.mxu0 %v198
      %233 = vmatprep.subr.mxu0 0.0
      %234 = vmatpush1.msra.mxu0 0.0
      %235 = vmatprep.subr.mxu0 0.0
      %236 = vmatpush1.msra.mxu0 0.0
      %237 = vmatprep.subr.mxu0 0.0
      %238 = vmatpush1.msra.mxu0 0.0
      %239 = vmatprep.subr.mxu0 0.0
      %240 = vmatpush1.msra.mxu0 0.0
      %241 = vmatprep.subr.mxu0 0.0
      %242 = vmatpush1.msra.mxu0 0.0
      %243 = vmatprep.subr.mxu0 0.0
      %244 = vmatpush1.msra.mxu0 0.0
      %245 = vmatprep.subr.mxu0 0.0
      %246 = vmatpush1.msra.mxu0 0.0
      %247 = vmatprep.subr.mxu0 0.0
      %248 = vmatpush1.msra.mxu0 0.0
      %249 = vmatprep.subr.mxu0 0.0
      %250 = vmatpush1.msra.mxu0 0.0
      %251 = vmatprep.subr.mxu0 0.0
      %252 = vmatpush1.msra.mxu0 0.0
      %253 = vmatprep.subr.mxu0 0.0
      %254 = vmatpush1.msra.mxu0 0.0
      %255 = vmatprep.subr.mxu0 0.0
      %256 = vmatpush1.msra.mxu0 0.0
      %257 = vmatprep.subr.mxu0 0.0
      %258 = vmatpush1.msra.mxu0 0.0
      %259 = vmatprep.subr.mxu0 0.0
      %260 = vmatpush1.msra.mxu0 0.0
      %261 = vmatprep.subr.mxu0 0.0
      %262 = vmatpush1.msra.mxu0 0.0
      %263 = vmatprep.subr.mxu0 0.0
      %264 = vmatpush1.msra.mxu0 0.0
      %265 = vmatprep.mubr.f32.mxu0 0.0
      %266 = vmatmul.mubr.f32.gmra.mrb[0].mxu0 %v175
      %v267 = vpop.f32.mrb[0].mxu0
      %v268 = vadd.f32 %v200, %v267
      %v269 = vpop.f32.mrb[0].mxu0
      %270 = vmatprep.mubr.f32.mxu0 0.0
      %271 = vmatmul.mubr.f32.gmra.mrb[0].mxu0 %v176
      %v272 = vpop.f32.mrb[0].mxu0
      %v273 = vadd.f32 %v200, %v272
      %v274 = vpop.f32.mrb[0].mxu0
      %275 = vmatprep.mubr.f32.mxu0 0.0
      %276 = vmatmul.mubr.f32.gmra.mrb[0].mxu0 %v177
      %v277 = vpop.f32.mrb[0].mxu0
      %v278 = vadd.f32 %v200, %v277
      %v279 = vpop.f32.mrb[0].mxu0
      %280 = vmatprep.mubr.f32.mxu0 0.0
      %281 = vmatmul.mubr.f32.gmra.mrb[0].mxu0 %v178
      %v282 = vpop.f32.mrb[0].mxu0
      %v283 = vadd.f32 %v200, %v282
      %v284 = vpop.f32.mrb[0].mxu0
      %285 = vmatprep.mubr.f32.mxu0 0.0
      %286 = vmatmul.mubr.f32.gmra.mrb[0].mxu0 %v179
      %v287 = vpop.f32.mrb[0].mxu0
      %v288 = vadd.f32 %v200, %v287
      %v289 = vpop.f32.mrb[0].mxu0
      %290 = vmatprep.mubr.f32.mxu0 0.0
      %291 = vmatmul.mubr.f32.gmra.mrb[0].mxu0 %v180
      %v292 = vpop.f32.mrb[0].mxu0
      %v293 = vadd.f32 %v200, %v292
      %v294 = vpop.f32.mrb[0].mxu0
      %295 = vmatprep.mubr.f32.mxu0 0.0
      %296 = vmatmul.mubr.f32.gmra.mrb[0].mxu0 %v181
      %v297 = vpop.f32.mrb[0].mxu0
      %v298 = vadd.f32 %v200, %v297
      %v299 = vpop.f32.mrb[0].mxu0
      %300 = vmatprep.mubr.f32.mxu0 0.0
      %301 = vmatmul.mubr.f32.gmra.mrb[0].mxu0 %v182
      %v302 = vpop.f32.mrb[0].mxu0
      %v303 = vadd.f32 %v200, %v302
      %v304 = vpop.f32.mrb[0].mxu0
      %305 = vdwg.mxu0
      %vm306 = vcmask 64512
      %307 = vst.msk [vmem:[%s173] sm:$0xff] %vm306, %v268
      %308 = vst.msk [vmem:[%s173 + $0x8] sm:$0xff] %vm306, %v273
      %309 = vst.msk [vmem:[%s173 + $0x10] sm:$0xff] %vm306, %v278
      %310 = vst.msk [vmem:[%s173 + $0x18] sm:$0xff] %vm306, %v283
      %311 = vst.msk [vmem:[%s173 + $0x20] sm:$0xff] %vm306, %v288
      %312 = vst.msk [vmem:[%s173 + $0x28] sm:$0xff] %vm306, %v293
      %313 = vst.msk [vmem:[%s173 + $0x30] sm:$0xff] %vm306, %v298
      %314 = vst.msk [vmem:[%s173 + $0x38] sm:$0xff] %vm306, %v303
      %s315 = smul.u32 8, %s15
      %p316 = scmp.lt.s32.totalorder %s315, 15
      %s317 = scalar_select %p316, %s315, 15
      %s318 = smul.addr %s317, 8
      %s319 = scalar_lea.vmem %s3, %s318
      // Predicated region
      $region33: #{tpu_custom_call.1} parent=31 // pred_check
        %p320 = pneg %p101
      $region34: #{tpu_custom_call.1} parent=31 // pred_check_branch
        %322 = sbr.rel (%p320) target = $region36
      $region35: #{tpu_custom_call.1} parent=31 // pred_region
        %s323 = smul.u32 8, %s15
      $region36: #{tpu_custom_call.1} parent=31 // pred_fallthru
        _
    $region32: #{tpu_custom_call.1} parent=5 // pred_fallthru
      _
    %p324 = scmp.le.s32.totalorder 2, %s10
    // Predicated region
    $region37: #{tpu_custom_call.1} parent=5 // pred_check
      %p325 = pneg %p324
    $region38: #{tpu_custom_call.1} parent=5 // pred_check_branch
      %327 = sbr.rel (%p325) target = $region40
    $region39: #{tpu_custom_call.1} parent=5 // pred_region
      %s328 = ssub.s32 %s10, 2
      // Predicated region
      $region41: #{tpu_custom_call.1} parent=39 // pred_check
        %p329 = pneg %p107
      $region42: #{tpu_custom_call.1} parent=39 // pred_check_branch
        %331 = sbr.rel (%p329) target = $region44
      $region43: #{tpu_custom_call.1} parent=39 // pred_region
        %s332 = smul.u32 8, %s16
        %p333 = scmp.lt.s32.totalorder %s332, 15
        %s334 = scalar_select %p333, %s332, 15
        %s335 = smul.addr %s334, 8
        %s336 = scalar_lea.vmem %s3, %s335
      $region44: #{tpu_custom_call.1} parent=39 // pred_fallthru
        _
    $region40: #{tpu_custom_call.1} parent=5 // pred_fallthru
      _
  $region6: #{tpu_custom_call.1} parent=0 // loop_footer
    %s14 = sadd.s32 1, %s10
  $region7: #{tpu_custom_call.1} parent=0 // loop_footer_branch
    %9 = sbr.rel target = $region3
  $region8: #{tpu_custom_call.1} parent=0 // loop_exit
    _

</llo_original>
